<compile_context>
chip_gen: v7x
topology: tpu7x:2x2x1
jax: 0.10.0
libtpu: 0.0.40
codegen_flags: <defaults>
</compile_context>

<pallas_src>
import math

import jax
import jax.numpy as jnp
from jax.experimental import pallas as pl
from jax.experimental.pallas import tpu as pltpu


def _round_up(x: int, m: int) -> int:
    return ((x + m - 1) // m) * m


def _bilinear_prefactor_kernel(pi1_ref, pi2_ref, out_ref):
    # pi1_ref, pi2_ref : (1, TB)  -- batch on the lane axis (lane-dense)
    # out_ref          : (M, TB)  -- components on sublanes, batch on lanes
    prod = pi1_ref[...] * pi2_ref[...]                 # (1, TB) full-width VPU mul
    # Sublane-direction replication of the single product row to M rows.
    out_ref[...] = jnp.broadcast_to(prod, out_ref.shape)


def bilinear_two_body_prefactor(pi_1_b, pi_2_b, n_components, *, lane_tile=128 * 1024):
    """JAX/Pallas equivalent of BiLinearTwoBodyPotentialPrefactorSimple.forward
    (with nu_1_bj = nu_2_bj = None)."""
    assert pi_1_b.shape == pi_2_b.shape
    batch_shape = pi_1_b.shape
    B = int(math.prod(batch_shape)) if batch_shape else 1
    M = int(n_components)
    out_dtype = jnp.result_type(pi_1_b.dtype, pi_2_b.dtype)

    if M == 0:
        return jnp.zeros(batch_shape + (0,), out_dtype)

    # Flatten batch onto the lane axis; one (1, B) row per pi vector.
    pi1 = pi_1_b.reshape(1, -1).astype(out_dtype)
    pi2 = pi_2_b.reshape(1, -1).astype(out_dtype)

    itemsize = jnp.dtype(out_dtype).itemsize
    B_lanes = _round_up(max(B, 1), 128)

    # Lane tile: multiple of 128; cap so the (M, TB) output block stays ~2 MiB
    # (double-buffered comfortably inside every generation's scoped VMEM).
    vmem_cap_tb = max(128, ((2 * 1024 * 1024) // (itemsize * M)) // 128 * 128)
    TB = min(_round_up(lane_tile, 128), vmem_cap_tb, B_lanes)
    # Keep at least two grid steps when the batch is large so the "parallel"
    # grid axis can shard across both TensorCores on v7x.
    if B_lanes >= 256:
        half = ((B_lanes // 2 + 127) // 128) * 128
        TB = min(TB, half)
    TB = max(TB, 128)
    B_pad = _round_up(B_lanes, TB)

    if B_pad != B:
        pi1 = jnp.pad(pi1, ((0, 0), (0, B_pad - B)))
        pi2 = jnp.pad(pi2, ((0, 0), (0, B_pad - B)))

    grid = (B_pad // TB,)

    out_mb = pl.pallas_call(
        _bilinear_prefactor_kernel,
        out_shape=jax.ShapeDtypeStruct((M, B_pad), out_dtype),
        grid=grid,
        in_specs=[
            pl.BlockSpec((1, TB), lambda i: (0, i)),
            pl.BlockSpec((1, TB), lambda i: (0, i)),
        ],
        out_specs=pl.BlockSpec((M, TB), lambda i: (0, i)),
        compiler_params=pltpu.CompilerParams(
            dimension_semantics=("parallel",)),
    )(pi1, pi2)

    # Strip lane padding and restore the module's (batch..., n_components)
    # layout.  (A consumer that accepts the (M, B) layout could skip this.)
    return out_mb[:, :B].T.reshape(batch_shape + (M,))


def _reference(pi_1_b, pi_2_b, n_components):
    """Pure-JAX reference of the module's forward pass."""
    prod = (pi_1_b * pi_2_b)[..., None]
    return jnp.broadcast_to(prod, pi_1_b.shape + (n_components,))


if __name__ == "__main__":
    B = 8             # batch of (pi_1, pi_2) pairs
    N_COMPONENTS = 4  # n_components of the prefactor expansion

    key = jax.random.PRNGKey(0)
    k1, k2 = jax.random.split(key)

    # pi_*_b are probabilities -> strictly positive.
    pi_1_b = jax.random.uniform(k1, (B,), jnp.float32, minval=0.05, maxval=0.95)
    pi_2_b = jax.random.uniform(k2, (B,), jnp.float32, minval=0.05, maxval=0.95)

    out_bm = bilinear_two_body_prefactor(pi_1_b, pi_2_b, N_COMPONENTS)
    out_bm = jax.block_until_ready(out_bm)

    assert out_bm.shape == (B, N_COMPONENTS)
    assert out_bm.dtype == jnp.float32

    ref_bm = _reference(pi_1_b, pi_2_b, N_COMPONENTS)
    assert jnp.allclose(out_bm, ref_bm, rtol=1e-6, atol=1e-7), (
        "Pallas kernel output mismatch vs reference")

    print("KERNEL_OK")
</pallas_src>

<mosaic_0001>
module attributes {stable_mosaic.version = 11 : i64} {
  func.func @_bilinear_prefactor_kernel(%arg0: i32, %arg1: memref<1x128xf32, #tpu.memory_space<vmem>>, %arg2: memref<1x128xf32, #tpu.memory_space<vmem>>, %arg3: memref<4x128xf32, #tpu.memory_space<vmem>>) attributes {dimension_semantics = [#tpu.dimension_semantics<parallel>], iteration_bounds = array<i64: 1>, scalar_prefetch = 0 : i64, scratch_operands = 0 : i64, tpu.core_type = #tpu.core_type<tc>, window_params = [{transform_indices = @transform_0, window_bounds = array<i64: 1, 128>}, {transform_indices = @transform_1, window_bounds = array<i64: 1, 128>}, {transform_indices = @transform_2, window_bounds = array<i64: 4, 128>}]} {
    %c0 = arith.constant 0 : index
    %c0_0 = arith.constant 0 : index
    %0 = vector.load %arg1[%c0, %c0_0] : memref<1x128xf32, #tpu.memory_space<vmem>>, vector<1x128xf32>
    %c0_1 = arith.constant 0 : index
    %c0_2 = arith.constant 0 : index
    %1 = vector.load %arg2[%c0_1, %c0_2] : memref<1x128xf32, #tpu.memory_space<vmem>>, vector<1x128xf32>
    %2 = arith.mulf %0, %1 : vector<1x128xf32>
    %3 = vector.shape_cast %2 : vector<1x128xf32> to vector<1x128xf32>
    %4 = vector.broadcast %3 : vector<1x128xf32> to vector<4x128xf32>
    %c0_3 = arith.constant 0 : index
    %c0_4 = arith.constant 0 : index
    %5 = vector.load %arg3[%c0_3, %c0_4] : memref<4x128xf32, #tpu.memory_space<vmem>>, vector<4x128xf32>
    tpu.vector_store %arg3[%c0_3, %c0_4], %4 {strides = array<i32>} : memref<4x128xf32, #tpu.memory_space<vmem>>, vector<4x128xf32>,
    return
  }
  func.func @transform_0(%arg0: i32) -> (i32, i32) {
    %c0_i32 = arith.constant 0 : i32
    %c0_i32_0 = arith.constant 0 : i32
    return %c0_i32, %arg0 : i32, i32
  }
  func.func @transform_1(%arg0: i32) -> (i32, i32) {
    %c0_i32 = arith.constant 0 : i32
    %c0_i32_0 = arith.constant 0 : i32
    return %c0_i32, %arg0 : i32, i32
  }
  func.func @transform_2(%arg0: i32) -> (i32, i32) {
    %c0_i32 = arith.constant 0 : i32
    %c0_i32_0 = arith.constant 0 : i32
    return %c0_i32, %arg0 : i32, i32
  }
}

</mosaic_0001>

<llo_original>
// kernel: tpu_custom_call.1
$region0: #{tpu_custom_call.1}
  #allocation0 [shape = 'u32[]', space=smem, size = 0x4, offset = 0x4, fixed_abs, tag = 'smem constant byte address 0x4 - core index']
  #allocation1 [shape = 'u32[144,128]{1,0:T(1,128)}', space=vmem, size = 0x12000, scoped, tag = 'internal scratch']
  %s0 = inlined_call_operand.hbm [shape: f32[1,128], index: 0, kind: input, shape index: {}]
  %s1 = inlined_call_operand.vmem [shape: f32[1,128], index: 1, kind: input, shape index: {}]
  %s2 = inlined_call_operand.hbm [shape: f32[4,128], index: 2, kind: output, shape index: {}]
  %s3 = sld [smem:[#allocation0]]
  $region22: #{tpu_custom_call.1} parent=0
    _
  %s5 = ssub.s32 1, %s3
  %s6 = scalar_select 0, %s5, %s3
  $region1: #{tpu_custom_call.1} parent=0
    #allocation2 [shape = 'u8[512]{0}', space=vmem, size = 0x400, scoped, tag = 'input window, operand 0, single buffered']
    #allocation3 [shape = 's32[1]{0}', space=sflag, size = 0x4, scoped, tag = 'scoped memory for tpu_custom_call.1']
    #allocation4 [shape = 's32[1]{0}', space=sflag, size = 0x4, scoped, tag = 'scoped memory for tpu_custom_call.1']
    #allocation5 [shape = 'u8[2048]{0}', space=vmem, size = 0x800, scoped, tag = 'output window, operand 0, single buffered']
    %7 = vsyncpa [#allocation3], 0
    %8 = vsyncpa [#allocation4], 0
    // Predicated region
    $region2: #{tpu_custom_call.1} parent=1 // pred_check
      _
    $region3: #{tpu_custom_call.1} parent=1 // pred_check_branch
      %10 = sbr.rel (0) target = $region5
    $region4: #{tpu_custom_call.1} parent=1 // pred_region
      %s12 = ssub.s32 16, 16
      %13 = vsyncadd [#allocation3], %s12
      %s15 = sshll.u32 [#allocation2], 4
      %s16 = int_to_ptr.vmem [resolvable:$true] %s15
      %18 = dma.hbm_to_vmem [thread:$0]  %s0, 16, %s16, [#allocation3]
    $region5: #{tpu_custom_call.1} parent=1 // pred_fallthru
      _
    // Predicated region
    $region6: #{tpu_custom_call.1} parent=1 // pred_check
      _
    $region7: #{tpu_custom_call.1} parent=1 // pred_check_branch
      %20 = sbr.rel (0) target = $region9
    $region8: #{tpu_custom_call.1} parent=1 // pred_region
      _
    $region9: #{tpu_custom_call.1} parent=1 // pred_fallthru
      _
    // Predicated region
    $region10: #{tpu_custom_call.1} parent=1 // pred_check
      _
    $region11: #{tpu_custom_call.1} parent=1 // pred_check_branch
      %22 = sbr.rel (0) target = $region13
    $region12: #{tpu_custom_call.1} parent=1 // pred_region
      %23 = dma.done [#allocation3], 16
    $region13: #{tpu_custom_call.1} parent=1 // pred_fallthru
      _
    %v24 = vld [vmem:[#allocation2] sm:$0x1]
    %v25 = vld [vmem:[%s1] sm:$0x1]
    %v26 = vmul.f32 %v24, %v25
    %v28 = vlaneseq
    %v29 = vshrl.u32 %v28, 7
    %v30 = vsub.s32 0, %v29
    %v31 = vrot.slane %v26, %v30
    %33 = vst [vmem:[#allocation5] sm:$0xf] %v31
    // Predicated region
    $region14: #{tpu_custom_call.1} parent=1 // pred_check
      _
    $region15: #{tpu_custom_call.1} parent=1 // pred_check_branch
      %35 = sbr.rel (0) target = $region17
    $region16: #{tpu_custom_call.1} parent=1 // pred_region
      %s37 = ssub.s32 64, 64
      %38 = vsyncadd [#allocation4], %s37
      %s40 = sshll.u32 [#allocation5], 4
      %s41 = int_to_ptr.vmem [resolvable:$true] %s40
      %43 = dma.vmem_to_hbm [thread:$0]  %s41, 64, %s2, [#allocation4]
    $region17: #{tpu_custom_call.1} parent=1 // pred_fallthru
      _
    // Predicated region
    $region18: #{tpu_custom_call.1} parent=1 // pred_check
      _
    $region19: #{tpu_custom_call.1} parent=1 // pred_check_branch
      %45 = sbr.rel (0) target = $region21
    $region20: #{tpu_custom_call.1} parent=1 // pred_region
      %46 = dma.done [#allocation4], 64
    $region21: #{tpu_custom_call.1} parent=1 // pred_fallthru
      _
    %47 = vsyncpa [#allocation3], 1
    %48 = vsyncpa [#allocation4], 1

</llo_original>
